<compile_context>
chip_gen: v7x
topology: tpu7x:2x2x1
jax: 0.10.0
libtpu: 0.0.40
codegen_flags: <defaults>
</compile_context>

<pallas_src>
import jax
import jax.numpy as jnp
from jax.experimental import pallas as pl
from jax.experimental.pallas import tpu as pltpu


# ------------------------------ helpers ------------------------------------

def _round_up(x, m):
    return (x + m - 1) // m * m


def _pad_to(x, shape):
    pads = [(0, t - s) for s, t in zip(x.shape, shape)]
    return jnp.pad(x, pads)


def im2col_3x3(x_nhwc):
    """x: [B, H, W, C] -> patches [B*H*W, 9*C] for a 3x3 conv with pad=1."""
    B, H, W, C = x_nhwc.shape
    xp = jnp.pad(x_nhwc, ((0, 0), (1, 1), (1, 1), (0, 0)))
    cols = []
    for kh in range(3):
        for kw in range(3):
            cols.append(xp[:, kh:kh + H, kw:kw + W, :])
    patches = jnp.concatenate(cols, axis=-1)          # [B, H, W, 9*C]
    return patches.reshape(B * H * W, 9 * C)


# ----------------------------- fused Pallas kernel --------------------------

def _fused_forward_kernel(p_ref, cw_ref, cb_ref, pool_ref,
                          wh_ref, bh_ref, wc_ref, bc_ref, o_ref):
    # p_ref    : [M, Kp]    bf16  im2col patches, M = B*HW (lane-dense Kp)
    # cw_ref   : [Kp, Fp]   bf16  conv weight (im2col layout, zero-padded)
    # cb_ref   : [1, Fp]    f32   conv bias
    # pool_ref : [Bp, M]    bf16  pooling matrix (1/HW on own-batch columns)
    # wh_ref   : [L, Fp, Fp] bf16 stacked hidden linear weights
    # bh_ref   : [L, 1, Fp]  f32  stacked hidden linear biases
    # wc_ref   : [Fp, Cp]   bf16  classifier weight
    # bc_ref   : [1, Cp]    f32   classifier bias
    # o_ref    : [Bp, Cp]   f32   padded logits (lane-dense store)

    # 3x3 conv as a single im2col matmul on the MXU (bf16 operands, f32 accum)
    y = jnp.dot(p_ref[...], cw_ref[...], preferred_element_type=jnp.float32)   # [M, Fp]
    y = jnp.maximum(y + cb_ref[...], 0.0)                                       # bias + ReLU (f32 VPU)

    # global average pool as a matmul: (Bp, M) @ (M, Fp) -> (Bp, Fp), rides the MXU
    feats = jnp.dot(pool_ref[...], y.astype(jnp.bfloat16),
                    preferred_element_type=jnp.float32)                          # [Bp, Fp]

    # LinearBlock_with_classifier: num_layers x (Linear -> ReLU -> Dropout[id]) -> Linear
    h = feats
    num_layers = wh_ref.shape[0]
    for l in range(num_layers):  # static unrolled loop
        h = jnp.dot(h.astype(jnp.bfloat16), wh_ref[l],
                    preferred_element_type=jnp.float32) + bh_ref[l]
        h = jnp.maximum(h, 0.0)
        # nn.Dropout is identity at inference -> no-op

    o_ref[...] = jnp.dot(h.astype(jnp.bfloat16), wc_ref[...],
                         preferred_element_type=jnp.float32) + bc_ref[...]


# ------------------------------ forward wrapper ------------------------------

def pretrained_model_forward(x_nchw, params, num_classes):
    """x_nchw: [B, C, H, W] float32 -> logits [B, num_classes] float32."""
    B, C_in, H, W = x_nchw.shape
    HW = H * W
    M = B * HW
    F = params["conv_w"].shape[1]
    L = params["wh"].shape[0]

    K = 9 * C_in
    Kp = _round_up(K, 128)
    Fp = _round_up(F, 128)
    Cp = _round_up(num_classes, 128)
    Bp = max(_round_up(B, 8), 8)

    # layout: NCHW -> NHWC -> im2col [M, K]; pad lane dims to multiples of 128.
    x_nhwc = jnp.transpose(x_nchw, (0, 2, 3, 1))
    patches = _pad_to(im2col_3x3(x_nhwc), (M, Kp)).astype(jnp.bfloat16)

    conv_w = _pad_to(params["conv_w"], (Kp, Fp)).astype(jnp.bfloat16)
    conv_b = _pad_to(params["conv_b"], (1, Fp)).astype(jnp.float32)

    # pooling matrix: row b has 1/HW on its own HW columns, 0 elsewhere (incl. pad rows)
    rows = jnp.arange(Bp)[:, None]
    cols = jnp.arange(M)[None, :] // HW
    pool = jnp.where(rows == cols, 1.0 / HW, 0.0).astype(jnp.bfloat16)          # [Bp, M]

    wh = _pad_to(params["wh"], (L, Fp, Fp)).astype(jnp.bfloat16)
    bh = _pad_to(params["bh"], (L, 1, Fp)).astype(jnp.float32)
    wc = _pad_to(params["wc"], (Fp, Cp)).astype(jnp.bfloat16)
    bc = _pad_to(params["bc"], (1, Cp)).astype(jnp.float32)

    vmem = pl.BlockSpec(memory_space=pltpu.MemorySpace.VMEM)
    logits_padded = pl.pallas_call(
        _fused_forward_kernel,
        out_shape=jax.ShapeDtypeStruct((Bp, Cp), jnp.float32),
        in_specs=[vmem] * 8,
        out_specs=vmem,
    )(patches, conv_w, conv_b, pool, wh, bh, wc, bc)

    return logits_padded[:B, :num_classes]


# ------------------------------ parameter init ------------------------------

def xavier_uniform(key, shape):
    fan_in, fan_out = shape[-2], shape[-1]
    bound = (6.0 / (fan_in + fan_out)) ** 0.5
    return jax.random.uniform(key, shape, jnp.float32, -bound, bound)


def init_params(key, c_in, num_features, num_layers, num_classes):
    # Stand-in for timm pretrained weights: He-normal conv stem; xavier_uniform
    # linears exactly as in PretrainedModel.__init__.
    k_conv, k_h, k_c = jax.random.split(key, 3)
    w_conv_t = jax.random.normal(k_conv, (num_features, c_in, 3, 3), jnp.float32)
    w_conv_t = w_conv_t * (2.0 / (9 * c_in)) ** 0.5
    # [F, Cin, 3, 3] -> im2col layout [9*Cin, F] (tap order matches im2col_3x3: kh, kw, c)
    conv_w = jnp.transpose(w_conv_t, (2, 3, 1, 0)).reshape(9 * c_in, num_features)
    conv_b = jnp.zeros((1, num_features), jnp.float32)

    hk = jax.random.split(k_h, num_layers)
    wh = jnp.stack([xavier_uniform(hk[l], (num_features, num_features))
                    for l in range(num_layers)], axis=0)                  # [L, F, F]
    bh = jnp.zeros((num_layers, 1, num_features), jnp.float32)

    wc = xavier_uniform(k_c, (num_features, num_classes))                 # [F, C]
    bc = jnp.zeros((1, num_classes), jnp.float32)
    return dict(conv_w=conv_w, conv_b=conv_b, wh=wh, bh=bh, wc=wc, bc=bc)


# ----------------------------------- main -----------------------------------

if __name__ == "__main__":
    B, C_IN, H, W = 2, 3, 16, 16          # small RGB-like images (NCHW, PyTorch layout)
    NUM_FEATURES = 32                     # backbone num_features
    NUM_LAYERS = 2                        # LinearBlock_with_classifier depth
    NUM_CLASSES = 10
    # dropout_ratio only affects training; identity at inference.

    key = jax.random.PRNGKey(0)
    k_x, k_p = jax.random.split(key)
    x = jax.random.normal(k_x, (B, C_IN, H, W), jnp.float32)
    params = init_params(k_p, C_IN, NUM_FEATURES, NUM_LAYERS, NUM_CLASSES)

    logits = pretrained_model_forward(x, params, NUM_CLASSES)
    jax.block_until_ready(logits)
    assert logits.shape == (B, NUM_CLASSES)
    assert logits.dtype == jnp.float32
    assert bool(jnp.all(jnp.isfinite(logits)))
    print("KERNEL_OK")
</pallas_src>

<mosaic_0001>
module attributes {stable_mosaic.version = 11 : i64} {
  func.func @_fused_forward_kernel(%arg0: memref<512x128xbf16, #tpu.memory_space<vmem>>, %arg1: memref<128x128xbf16, #tpu.memory_space<vmem>>, %arg2: memref<1x128xf32, #tpu.memory_space<vmem>>, %arg3: memref<8x512xbf16, #tpu.memory_space<vmem>>, %arg4: memref<2x128x128xbf16, #tpu.memory_space<vmem>>, %arg5: memref<2x1x128xf32, #tpu.memory_space<vmem>>, %arg6: memref<128x128xbf16, #tpu.memory_space<vmem>>, %arg7: memref<1x128xf32, #tpu.memory_space<vmem>>, %arg8: memref<8x128xf32, #tpu.memory_space<vmem>>) attributes {dimension_semantics = [], scalar_prefetch = 0 : i64, scratch_operands = 0 : i64, tpu.core_type = #tpu.core_type<tc>} {
    %c0 = arith.constant 0 : index
    %c0_0 = arith.constant 0 : index
    %0 = vector.load %arg0[%c0, %c0_0] : memref<512x128xbf16, #tpu.memory_space<vmem>>, vector<512x128xbf16>
    %c0_1 = arith.constant 0 : index
    %c0_2 = arith.constant 0 : index
    %1 = vector.load %arg1[%c0_1, %c0_2] : memref<128x128xbf16, #tpu.memory_space<vmem>>, vector<128x128xbf16>
    %cst = arith.constant dense<0.000000e+00> : vector<512x128xf32>
    %2 = tpu.matmul %0, %1, %cst {dimension_numbers = #tpu.dot_dimension_numbers<[1], [0], [0], [1], [0, 0, 1, 1], [], []>} : vector<512x128xbf16>, vector<128x128xbf16>, vector<512x128xf32> -> vector<512x128xf32>
    %c0_3 = arith.constant 0 : index
    %c0_4 = arith.constant 0 : index
    %3 = vector.load %arg2[%c0_3, %c0_4] : memref<1x128xf32, #tpu.memory_space<vmem>>, vector<1x128xf32>
    %4 = vector.broadcast %3 : vector<1x128xf32> to vector<512x128xf32>
    %5 = arith.addf %2, %4 : vector<512x128xf32>
    %cst_5 = arith.constant 0.000000e+00 : f32
    %6 = vector.broadcast %cst_5 : f32 to vector<512x128xf32>
    %7 = arith.maximumf %5, %6 : vector<512x128xf32>
    %c0_6 = arith.constant 0 : index
    %c0_7 = arith.constant 0 : index
    %8 = vector.load %arg3[%c0_6, %c0_7] : memref<8x512xbf16, #tpu.memory_space<vmem>>, vector<8x512xbf16>
    %9 = arith.truncf %7 : vector<512x128xf32> to vector<512x128xbf16>
    %cst_8 = arith.constant dense<0.000000e+00> : vector<8x128xf32>
    %10 = tpu.matmul %8, %9, %cst_8 {dimension_numbers = #tpu.dot_dimension_numbers<[1], [0], [0], [1], [0, 0, 1, 1], [], []>} : vector<8x512xbf16>, vector<512x128xbf16>, vector<8x128xf32> -> vector<8x128xf32>
    %11 = arith.truncf %10 : vector<8x128xf32> to vector<8x128xbf16>
    %c0_9 = arith.constant 0 : index
    %c0_10 = arith.constant 0 : index
    %c0_11 = arith.constant 0 : index
    %12 = vector.load %arg4[%c0_9, %c0_10, %c0_11] : memref<2x128x128xbf16, #tpu.memory_space<vmem>>, vector<1x128x128xbf16>
    %13 = vector.shape_cast %12 : vector<1x128x128xbf16> to vector<128x128xbf16>
    %cst_12 = arith.constant dense<0.000000e+00> : vector<8x128xf32>
    %14 = tpu.matmul %11, %13, %cst_12 {dimension_numbers = #tpu.dot_dimension_numbers<[1], [0], [0], [1], [0, 0, 1, 1], [], []>} : vector<8x128xbf16>, vector<128x128xbf16>, vector<8x128xf32> -> vector<8x128xf32>
    %c0_13 = arith.constant 0 : index
    %c0_14 = arith.constant 0 : index
    %c0_15 = arith.constant 0 : index
    %15 = vector.load %arg5[%c0_13, %c0_14, %c0_15] : memref<2x1x128xf32, #tpu.memory_space<vmem>>, vector<1x1x128xf32>
    %16 = vector.shape_cast %15 : vector<1x1x128xf32> to vector<1x128xf32>
    %17 = vector.broadcast %16 : vector<1x128xf32> to vector<8x128xf32>
    %18 = arith.addf %14, %17 : vector<8x128xf32>
    %cst_16 = arith.constant 0.000000e+00 : f32
    %19 = vector.broadcast %cst_16 : f32 to vector<8x128xf32>
    %20 = arith.maximumf %18, %19 : vector<8x128xf32>
    %21 = arith.truncf %20 : vector<8x128xf32> to vector<8x128xbf16>
    %c1 = arith.constant 1 : index
    %c0_17 = arith.constant 0 : index
    %c0_18 = arith.constant 0 : index
    %22 = vector.load %arg4[%c1, %c0_17, %c0_18] : memref<2x128x128xbf16, #tpu.memory_space<vmem>>, vector<1x128x128xbf16>
    %23 = vector.shape_cast %22 : vector<1x128x128xbf16> to vector<128x128xbf16>
    %cst_19 = arith.constant dense<0.000000e+00> : vector<8x128xf32>
    %24 = tpu.matmul %21, %23, %cst_19 {dimension_numbers = #tpu.dot_dimension_numbers<[1], [0], [0], [1], [0, 0, 1, 1], [], []>} : vector<8x128xbf16>, vector<128x128xbf16>, vector<8x128xf32> -> vector<8x128xf32>
    %c1_20 = arith.constant 1 : index
    %c0_21 = arith.constant 0 : index
    %c0_22 = arith.constant 0 : index
    %25 = vector.load %arg5[%c1_20, %c0_21, %c0_22] : memref<2x1x128xf32, #tpu.memory_space<vmem>>, vector<1x1x128xf32>
    %26 = vector.shape_cast %25 : vector<1x1x128xf32> to vector<1x128xf32>
    %27 = vector.broadcast %26 : vector<1x128xf32> to vector<8x128xf32>
    %28 = arith.addf %24, %27 : vector<8x128xf32>
    %cst_23 = arith.constant 0.000000e+00 : f32
    %29 = vector.broadcast %cst_23 : f32 to vector<8x128xf32>
    %30 = arith.maximumf %28, %29 : vector<8x128xf32>
    %31 = arith.truncf %30 : vector<8x128xf32> to vector<8x128xbf16>
    %c0_24 = arith.constant 0 : index
    %c0_25 = arith.constant 0 : index
    %32 = vector.load %arg6[%c0_24, %c0_25] : memref<128x128xbf16, #tpu.memory_space<vmem>>, vector<128x128xbf16>
    %cst_26 = arith.constant dense<0.000000e+00> : vector<8x128xf32>
    %33 = tpu.matmul %31, %32, %cst_26 {dimension_numbers = #tpu.dot_dimension_numbers<[1], [0], [0], [1], [0, 0, 1, 1], [], []>} : vector<8x128xbf16>, vector<128x128xbf16>, vector<8x128xf32> -> vector<8x128xf32>
    %c0_27 = arith.constant 0 : index
    %c0_28 = arith.constant 0 : index
    %34 = vector.load %arg7[%c0_27, %c0_28] : memref<1x128xf32, #tpu.memory_space<vmem>>, vector<1x128xf32>
    %35 = vector.broadcast %34 : vector<1x128xf32> to vector<8x128xf32>
    %36 = arith.addf %33, %35 : vector<8x128xf32>
    %c0_29 = arith.constant 0 : index
    %c0_30 = arith.constant 0 : index
    %37 = vector.load %arg8[%c0_29, %c0_30] : memref<8x128xf32, #tpu.memory_space<vmem>>, vector<8x128xf32>
    tpu.vector_store %arg8[%c0_29, %c0_30], %36 {strides = array<i32>} : memref<8x128xf32, #tpu.memory_space<vmem>>, vector<8x128xf32>,
    return
  }
}

</mosaic_0001>

<llo_original>
// kernel: tpu_custom_call.1
$region0: #{tpu_custom_call.1}
  #allocation0 [shape = 'u32[]', space=smem, size = 0x4, offset = 0x4, fixed_abs, tag = 'smem constant byte address 0x4 - core index']
  #allocation1 [shape = 'u32[144,128]{1,0:T(1,128)}', space=vmem, size = 0x12000, scoped, tag = 'internal scratch']
  %s0 = inlined_call_operand.hbm [shape: bf16[512,128], index: 0, kind: input, shape index: {}]
  %s1 = inlined_call_operand.hbm [shape: bf16[128,128], index: 1, kind: input, shape index: {}]
  %s2 = inlined_call_operand.vmem [shape: f32[1,128], index: 2, kind: input, shape index: {}]
  %s3 = inlined_call_operand.hbm [shape: bf16[8,512], index: 3, kind: input, shape index: {}]
  %s4 = inlined_call_operand.hbm [shape: bf16[2,128,128], index: 4, kind: input, shape index: {}]
  %s5 = inlined_call_operand.vmem [shape: f32[2,1,128], index: 5, kind: input, shape index: {}]
  %s6 = inlined_call_operand.hbm [shape: bf16[128,128], index: 6, kind: input, shape index: {}]
  %s7 = inlined_call_operand.vmem [shape: f32[1,128], index: 7, kind: input, shape index: {}]
  %s8 = inlined_call_operand.hbm [shape: f32[8,128], index: 8, kind: output, shape index: {}]
  %s9 = sld [smem:[#allocation0]]
  $region62: #{tpu_custom_call.1} parent=0
    _
  %s11 = ssub.s32 1, %s9
  %s12 = scalar_select 0, %s11, %s9
  $region1: #{tpu_custom_call.1} parent=0
    #allocation2 [shape = 'u8[131072]{0}', space=vmem, size = 0x20000, scoped, tag = 'input window, operand 0, single buffered']
    #allocation3 [shape = 's32[1]{0}', space=sflag, size = 0x4, scoped, tag = 'scoped memory for tpu_custom_call.1']
    #allocation4 [shape = 's32[1]{0}', space=sflag, size = 0x4, scoped, tag = 'scoped memory for tpu_custom_call.1']
    #allocation5 [shape = 'u8[32768]{0}', space=vmem, size = 0x8000, scoped, tag = 'input window, operand 1, single buffered']
    #allocation6 [shape = 's32[1]{0}', space=sflag, size = 0x4, scoped, tag = 'scoped memory for tpu_custom_call.1']
    #allocation7 [shape = 'u8[8192]{0}', space=vmem, size = 0x2000, scoped, tag = 'input window, operand 3, single buffered']
    #allocation8 [shape = 'u8[65536]{0}', space=vmem, size = 0x10000, scoped, tag = 'input window, operand 4, single buffered']
    #allocation9 [shape = 's32[1]{0}', space=sflag, size = 0x4, scoped, tag = 'scoped memory for tpu_custom_call.1']
    #allocation10 [shape = 'u8[32768]{0}', space=vmem, size = 0x8000, scoped, tag = 'input window, operand 6, single buffered']
    #allocation11 [shape = 'u8[4096]{0}', space=vmem, size = 0x1000, scoped, tag = 'output window, operand 0, single buffered']
    %13 = vsyncpa [#allocation3], 0
    %14 = vsyncpa [#allocation6], 0
    %15 = vsyncpa [#allocation9], 0
    %16 = vsyncpa [#allocation4], 0
    // Predicated region
    $region2: #{tpu_custom_call.1} parent=1 // pred_check
      _
    $region3: #{tpu_custom_call.1} parent=1 // pred_check_branch
      %18 = sbr.rel (0) target = $region5
    $region4: #{tpu_custom_call.1} parent=1 // pred_region
      %s20 = ssub.s32 4096, 4096
      %21 = vsyncadd [#allocation3], %s20
      %s22 = sshll.u32 [#allocation2], 4
      %s23 = int_to_ptr.vmem [resolvable:$true] %s22
      %28 = dma.hbm_to_vmem [thread:$0]  %s0, 4096, %s23, [#allocation3], 64, 64, 4
    $region5: #{tpu_custom_call.1} parent=1 // pred_fallthru
      _
    // Predicated region
    $region6: #{tpu_custom_call.1} parent=1 // pred_check
      _
    $region7: #{tpu_custom_call.1} parent=1 // pred_check_branch
      %30 = sbr.rel (0) target = $region9
    $region8: #{tpu_custom_call.1} parent=1 // pred_region
      %s32 = ssub.s32 1024, 1024
      %33 = vsyncadd [#allocation6], %s32
      %s34 = sshll.u32 [#allocation5], 4
      %s35 = int_to_ptr.vmem [resolvable:$true] %s34
      %40 = dma.hbm_to_vmem [thread:$0]  %s1, 1024, %s35, [#allocation6], 64, 64, 4
    $region9: #{tpu_custom_call.1} parent=1 // pred_fallthru
      _
    // Predicated region
    $region10: #{tpu_custom_call.1} parent=1 // pred_check
      _
    $region11: #{tpu_custom_call.1} parent=1 // pred_check_branch
      %42 = sbr.rel (0) target = $region13
    $region12: #{tpu_custom_call.1} parent=1 // pred_region
      _
    $region13: #{tpu_custom_call.1} parent=1 // pred_fallthru
      _
    // Predicated region
    $region14: #{tpu_custom_call.1} parent=1 // pred_check
      _
    $region15: #{tpu_custom_call.1} parent=1 // pred_check_branch
      %44 = sbr.rel (0) target = $region17
    $region16: #{tpu_custom_call.1} parent=1 // pred_region
      %s46 = ssub.s32 256, 256
      %47 = vsyncadd [#allocation6], %s46
      %s49 = sshll.u32 [#allocation7], 4
      %s50 = int_to_ptr.vmem [resolvable:$true] %s49
      %52 = dma.hbm_to_vmem [thread:$0]  %s3, 256, %s50, [#allocation6]
    $region17: #{tpu_custom_call.1} parent=1 // pred_fallthru
      _
    // Predicated region
    $region18: #{tpu_custom_call.1} parent=1 // pred_check
      _
    $region19: #{tpu_custom_call.1} parent=1 // pred_check_branch
      %54 = sbr.rel (0) target = $region21
    $region20: #{tpu_custom_call.1} parent=1 // pred_region
      %s56 = ssub.s32 2048, 2048
      %57 = vsyncadd [#allocation9], %s56
      %s58 = sshll.u32 [#allocation8], 4
      %s59 = int_to_ptr.vmem [resolvable:$true] %s58
      %64 = dma.hbm_to_vmem [thread:$0]  %s4, 2048, %s59, [#allocation9], 64, 64, 4
    $region21: #{tpu_custom_call.1} parent=1 // pred_fallthru
      _
    // Predicated region
    $region22: #{tpu_custom_call.1} parent=1 // pred_check
      _
    $region23: #{tpu_custom_call.1} parent=1 // pred_check_branch
      %66 = sbr.rel (0) target = $region25
    $region24: #{tpu_custom_call.1} parent=1 // pred_region
      _
    $region25: #{tpu_custom_call.1} parent=1 // pred_fallthru
      _
    // Predicated region
    $region26: #{tpu_custom_call.1} parent=1 // pred_check
      _
    $region27: #{tpu_custom_call.1} parent=1 // pred_check_branch
      %68 = sbr.rel (0) target = $region29
    $region28: #{tpu_custom_call.1} parent=1 // pred_region
      %s70 = ssub.s32 1024, 1024
      %71 = vsyncadd [#allocation9], %s70
      %s72 = sshll.u32 [#allocation10], 4
      %s73 = int_to_ptr.vmem [resolvable:$true] %s72
      %78 = dma.hbm_to_vmem [thread:$0]  %s6, 1024, %s73, [#allocation9], 64, 64, 4
    $region29: #{tpu_custom_call.1} parent=1 // pred_fallthru
      _
    // Predicated region
    $region30: #{tpu_custom_call.1} parent=1 // pred_check
      _
    $region31: #{tpu_custom_call.1} parent=1 // pred_check_branch
      %80 = sbr.rel (0) target = $region33
    $region32: #{tpu_custom_call.1} parent=1 // pred_region
      _
    $region33: #{tpu_custom_call.1} parent=1 // pred_fallthru
      _
    // Predicated region
    $region34: #{tpu_custom_call.1} parent=1 // pred_check
      _
    $region35: #{tpu_custom_call.1} parent=1 // pred_check_branch
      %82 = sbr.rel (0) target = $region37
    $region36: #{tpu_custom_call.1} parent=1 // pred_region
      %83 = dma.done [#allocation3], 4096
    $region37: #{tpu_custom_call.1} parent=1 // pred_fallthru
      _
    // Predicated region
    $region38: #{tpu_custom_call.1} parent=1 // pred_check
      _
    $region39: #{tpu_custom_call.1} parent=1 // pred_check_branch
      %85 = sbr.rel (0) target = $region41
    $region40: #{tpu_custom_call.1} parent=1 // pred_region
      %86 = dma.done [#allocation6], 1024
    $region41: #{tpu_custom_call.1} parent=1 // pred_fallthru
      _
    // Predicated region
    $region42: #{tpu_custom_call.1} parent=1 // pred_check
      _
    $region43: #{tpu_custom_call.1} parent=1 // pred_check_branch
      %88 = sbr.rel (0) target = $region45
    $region44: #{tpu_custom_call.1} parent=1 // pred_region
      %89 = dma.done [#allocation6], 256
    $region45: #{tpu_custom_call.1} parent=1 // pred_fallthru
      _
    // Predicated region
    $region46: #{tpu_custom_call.1} parent=1 // pred_check
      _
    $region47: #{tpu_custom_call.1} parent=1 // pred_check_branch
      %91 = sbr.rel (0) target = $region49
    $region48: #{tpu_custom_call.1} parent=1 // pred_region
      %92 = dma.done [#allocation9], 2048
    $region49: #{tpu_custom_call.1} parent=1 // pred_fallthru
      _
    // Predicated region
    $region50: #{tpu_custom_call.1} parent=1 // pred_check
      _
    $region51: #{tpu_custom_call.1} parent=1 // pred_check_branch
      %94 = sbr.rel (0) target = $region53
    $region52: #{tpu_custom_call.1} parent=1 // pred_region
      %95 = dma.done [#allocation9], 1024
    $region53: #{tpu_custom_call.1} parent=1 // pred_fallthru
      _
    %v97 = vld [vmem:[#allocation2] sm:$0xf]
    %v98 = vld [vmem:[#allocation2 + $0x4] sm:$0xf]
    %v99 = vld [vmem:[#allocation2 + $0x8] sm:$0xf]
    %v100 = vld [vmem:[#allocation2 + $0xc] sm:$0xf]
    %v101 = vld [vmem:[#allocation2 + $0x10] sm:$0xf]
    %v102 = vld [vmem:[#allocation2 + $0x14] sm:$0xf]
    %v103 = vld [vmem:[#allocation2 + $0x18] sm:$0xf]
    %v104 = vld [vmem:[#allocation2 + $0x1c] sm:$0xf]
    %v105 = vld [vmem:[#allocation2 + $0x20] sm:$0xf]
    %v106 = vld [vmem:[#allocation2 + $0x24] sm:$0xf]
    %v107 = vld [vmem:[#allocation2 + $0x28] sm:$0xf]
    %v108 = vld [vmem:[#allocation2 + $0x2c] sm:$0xf]
    %v109 = vld [vmem:[#allocation2 + $0x30] sm:$0xf]
    %v110 = vld [vmem:[#allocation2 + $0x34] sm:$0xf]
    %v111 = vld [vmem:[#allocation2 + $0x38] sm:$0xf]
    %v112 = vld [vmem:[#allocation2 + $0x3c] sm:$0xf]
    %v113 = vld [vmem:[#allocation2 + $0x40] sm:$0xf]
    %v114 = vld [vmem:[#allocation2 + $0x44] sm:$0xf]
    %v115 = vld [vmem:[#allocation2 + $0x48] sm:$0xf]
    %v116 = vld [vmem:[#allocation2 + $0x4c] sm:$0xf]
    %v117 = vld [vmem:[#allocation2 + $0x50] sm:$0xf]
    %v118 = vld [vmem:[#allocation2 + $0x54] sm:$0xf]
    %v119 = vld [vmem:[#allocation2 + $0x58] sm:$0xf]
    %v120 = vld [vmem:[#allocation2 + $0x5c] sm:$0xf]
    %v121 = vld [vmem:[#allocation2 + $0x60] sm:$0xf]
    %v122 = vld [vmem:[#allocation2 + $0x64] sm:$0xf]
    %v123 = vld [vmem:[#allocation2 + $0x68] sm:$0xf]
    %v124 = vld [vmem:[#allocation2 + $0x6c] sm:$0xf]
    %v125 = vld [vmem:[#allocation2 + $0x70] sm:$0xf]
    %v126 = vld [vmem:[#allocation2 + $0x74] sm:$0xf]
    %v127 = vld [vmem:[#allocation2 + $0x78] sm:$0xf]
    %v128 = vld [vmem:[#allocation2 + $0x7c] sm:$0xf]
    %v129 = vld [vmem:[#allocation2 + $0x80] sm:$0xf]
    %v130 = vld [vmem:[#allocation2 + $0x84] sm:$0xf]
    %v131 = vld [vmem:[#allocation2 + $0x88] sm:$0xf]
    %v132 = vld [vmem:[#allocation2 + $0x8c] sm:$0xf]
    %v133 = vld [vmem:[#allocation2 + $0x90] sm:$0xf]
    %v134 = vld [vmem:[#allocation2 + $0x94] sm:$0xf]
    %v135 = vld [vmem:[#allocation2 + $0x98] sm:$0xf]
    %v136 = vld [vmem:[#allocation2 + $0x9c] sm:$0xf]
    %v137 = vld [vmem:[#allocation2 + $0xa0] sm:$0xf]
    %v138 = vld [vmem:[#allocation2 + $0xa4] sm:$0xf]
    %v139 = vld [vmem:[#allocation2 + $0xa8] sm:$0xf]
    %v140 = vld [vmem:[#allocation2 + $0xac] sm:$0xf]
    %v141 = vld [vmem:[#allocation2 + $0xb0] sm:$0xf]
    %v142 = vld [vmem:[#allocation2 + $0xb4] sm:$0xf]
    %v143 = vld [vmem:[#allocation2 + $0xb8] sm:$0xf]
    %v144 = vld [vmem:[#allocation2 + $0xbc] sm:$0xf]
    %v145 = vld [vmem:[#allocation2 + $0xc0] sm:$0xf]
    %v146 = vld [vmem:[#allocation2 + $0xc4] sm:$0xf]
    %v147 = vld [vmem:[#allocation2 + $0xc8] sm:$0xf]
    %v148 = vld [vmem:[#allocation2 + $0xcc] sm:$0xf]
    %v149 = vld [vmem:[#allocation2 + $0xd0] sm:$0xf]
    %v150 = vld [vmem:[#allocation2 + $0xd4] sm:$0xf]
    %v151 = vld [vmem:[#allocation2 + $0xd8] sm:$0xf]
    %v152 = vld [vmem:[#allocation2 + $0xdc] sm:$0xf]
    %v153 = vld [vmem:[#allocation2 + $0xe0] sm:$0xf]
    %v154 = vld [vmem:[#allocation2 + $0xe4] sm:$0xf]
    %v155 = vld [vmem:[#allocation2 + $0xe8] sm:$0xf]
    %v156 = vld [vmem:[#allocation2 + $0xec] sm:$0xf]
    %v157 = vld [vmem:[#allocation2 + $0xf0] sm:$0xf]
    %v158 = vld [vmem:[#allocation2 + $0xf4] sm:$0xf]
    %v159 = vld [vmem:[#allocation2 + $0xf8] sm:$0xf]
    %v160 = vld [vmem:[#allocation2 + $0xfc] sm:$0xf]
    %v161 = vld [vmem:[#allocation5] sm:$0xf]
    %v162 = vld [vmem:[#allocation5 + $0x4] sm:$0xf]
    %v163 = vld [vmem:[#allocation5 + $0x8] sm:$0xf]
    %v164 = vld [vmem:[#allocation5 + $0xc] sm:$0xf]
    %v165 = vld [vmem:[#allocation5 + $0x10] sm:$0xf]
    %v166 = vld [vmem:[#allocation5 + $0x14] sm:$0xf]
    %v167 = vld [vmem:[#allocation5 + $0x18] sm:$0xf]
    %v168 = vld [vmem:[#allocation5 + $0x1c] sm:$0xf]
    %v169 = vld [vmem:[#allocation5 + $0x20] sm:$0xf]
    %v170 = vld [vmem:[#allocation5 + $0x24] sm:$0xf]
    %v171 = vld [vmem:[#allocation5 + $0x28] sm:$0xf]
    %v172 = vld [vmem:[#allocation5 + $0x2c] sm:$0xf]
    %v173 = vld [vmem:[#allocation5 + $0x30] sm:$0xf]
    %v174 = vld [vmem:[#allocation5 + $0x34] sm:$0xf]
    %v175 = vld [vmem:[#allocation5 + $0x38] sm:$0xf]
    %v176 = vld [vmem:[#allocation5 + $0x3c] sm:$0xf]
    %v177 = vld [vmem:[%s2] sm:$0x1]
    %v179 = vlaneseq
    %v180 = vshrl.u32 %v179, 7
    %v181 = vsub.s32 0, %v180
    %v182 = vrot.slane %v177, %v181
    %v248 = vunpack.c.l.b16 %v97
    %v249 = vunpack.c.l.b16 %v98
    %v250 = vunpack.c.l.b16 %v99
    %v251 = vunpack.c.l.b16 %v100
    %v252 = vunpack.c.l.b16 %v101
    %v253 = vunpack.c.l.b16 %v102
    %v254 = vunpack.c.l.b16 %v103
    %v255 = vunpack.c.l.b16 %v104
    %v256 = vunpack.c.l.b16 %v105
    %v257 = vunpack.c.l.b16 %v106
    %v258 = vunpack.c.l.b16 %v107
    %v259 = vunpack.c.l.b16 %v108
    %v260 = vunpack.c.l.b16 %v109
    %v261 = vunpack.c.l.b16 %v110
    %v262 = vunpack.c.l.b16 %v111
    %v263 = vunpack.c.l.b16 %v112
    %v264 = vunpack.c.l.b16 %v113
    %v265 = vunpack.c.l.b16 %v114
    %v266 = vunpack.c.l.b16 %v115
    %v267 = vunpack.c.l.b16 %v116
    %v268 = vunpack.c.l.b16 %v117
    %v269 = vunpack.c.l.b16 %v118
    %v270 = vunpack.c.l.b16 %v119
    %v271 = vunpack.c.l.b16 %v120
    %v272 = vunpack.c.l.b16 %v121
    %v273 = vunpack.c.l.b16 %v122
    %v274 = vunpack.c.l.b16 %v123
    %v275 = vunpack.c.l.b16 %v124
    %v276 = vunpack.c.l.b16 %v125
    %v277 = vunpack.c.l.b16 %v126
    %v278 = vunpack.c.l.b16 %v127
    %v279 = vunpack.c.l.b16 %v128
    %v280 = vunpack.c.l.b16 %v129
    %v281 = vunpack.c.l.b16 %v130
    %v282 = vunpack.c.l.b16 %v131
    %v283 = vunpack.c.l.b16 %v132
    %v284 = vunpack.c.l.b16 %v133
    %v285 = vunpack.c.l.b16 %v134
    %v286 = vunpack.c.l.b16 %v135
    %v287 = vunpack.c.l.b16 %v136
    %v288 = vunpack.c.l.b16 %v137
    %v289 = vunpack.c.l.b16 %v138
    %v290 = vunpack.c.l.b16 %v139
    %v291 = vunpack.c.l.b16 %v140
    %v292 = vunpack.c.l.b16 %v141
    %v293 = vunpack.c.l.b16 %v142
    %v294 = vunpack.c.l.b16 %v143
    %v295 = vunpack.c.l.b16 %v144
    %v296 = vunpack.c.l.b16 %v145
    %v297 = vunpack.c.l.b16 %v146
    %v298 = vunpack.c.l.b16 %v147
    %v299 = vunpack.c.l.b16 %v148
    %v300 = vunpack.c.l.b16 %v149
    %v301 = vunpack.c.l.b16 %v150
    %v302 = vunpack.c.l.b16 %v151
    %v303 = vunpack.c.l.b16 %v152
    %v304 = vunpack.c.l.b16 %v153
    %v305 = vunpack.c.l.b16 %v154
    %v306 = vunpack.c.l.b16 %v155
    %v307 = vunpack.c.l.b16 %v156
    %v308 = vunpack.c.l.b16 %v157
    %v309 = vunpack.c.l.b16 %v158
    %v310 = vunpack.c.l.b16 %v159
    %v311 = vunpack.c.l.b16 %v160
    %v312 = vpack.c.b16 %v249, %v248
    %v313 = vpack.c.b16 %v251, %v250
    %v314 = vpack.c.b16 %v253, %v252
    %v315 = vpack.c.b16 %v255, %v254
    %v316 = vpack.c.b16 %v257, %v256
    %v317 = vpack.c.b16 %v259, %v258
    %v318 = vpack.c.b16 %v261, %v260
    %v319 = vpack.c.b16 %v263, %v262
    %v320 = vpack.c.b16 %v265, %v264
    %v321 = vpack.c.b16 %v267, %v266
    %v322 = vpack.c.b16 %v269, %v268
    %v323 = vpack.c.b16 %v271, %v270
    %v324 = vpack.c.b16 %v273, %v272
    %v325 = vpack.c.b16 %v275, %v274
    %v326 = vpack.c.b16 %v277, %v276
    %v327 = vpack.c.b16 %v279, %v278
    %v328 = vpack.c.b16 %v281, %v280
    %v329 = vpack.c.b16 %v283, %v282
    %v330 = vpack.c.b16 %v285, %v284
    %v331 = vpack.c.b16 %v287, %v286
    %v332 = vpack.c.b16 %v289, %v288
    %v333 = vpack.c.b16 %v291, %v290
    %v334 = vpack.c.b16 %v293, %v292
    %v335 = vpack.c.b16 %v295, %v294
    %v336 = vpack.c.b16 %v297, %v296
    %v337 = vpack.c.b16 %v299, %v298
    %v338 = vpack.c.b16 %v301, %v300
    %v339 = vpack.c.b16 %v303, %v302
    %v340 = vpack.c.b16 %v305, %v304
    %v341 = vpack.c.b16 %v307, %v306
    %v342 = vpack.c.b16 %v309, %v308
    %v343 = vpack.c.b16 %v311, %v310
    %v392 = vunpack.c.l.b16 %v161
    %v393 = vunpack.c.l.b16 %v162
    %v394 = vunpack.c.l.b16 %v163
    %v395 = vunpack.c.l.b16 %v164
    %v396 = vunpack.c.l.b16 %v165
    %v397 = vunpack.c.l.b16 %v166
    %v398 = vunpack.c.l.b16 %v167
    %v399 = vunpack.c.l.b16 %v168
    %v400 = vunpack.c.l.b16 %v169
    %v401 = vunpack.c.l.b16 %v170
    %v402 = vunpack.c.l.b16 %v171
    %v403 = vunpack.c.l.b16 %v172
    %v404 = vunpack.c.l.b16 %v173
    %v405 = vunpack.c.l.b16 %v174
    %v406 = vunpack.c.l.b16 %v175
    %v407 = vunpack.c.l.b16 %v176
    %v408 = vpack.c.b16 %v393, %v392
    %v409 = vpack.c.b16 %v395, %v394
    %v410 = vpack.c.b16 %v397, %v396
    %v411 = vpack.c.b16 %v399, %v398
    %v412 = vpack.c.b16 %v401, %v400
    %v413 = vpack.c.b16 %v403, %v402
    %v414 = vpack.c.b16 %v405, %v404
    %v415 = vpack.c.b16 %v407, %v406
    %424 = vmatprep.subr.bf16.mxu0 0
    %425 = vmatpush1.bf16.msra.mxu0 %v408
    %426 = vmatprep.subr.bf16.mxu0 0
    %427 = vmatpush1.bf16.msra.mxu0 %v409
    %428 = vmatprep.subr.bf16.mxu0 0
    %429 = vmatpush1.bf16.msra.mxu0 %v410
    %430 = vmatprep.subr.bf16.mxu0 0
    %431 = vmatpush1.bf16.msra.mxu0 %v411
    %432 = vmatprep.subr.bf16.mxu0 0
    %433 = vmatpush1.bf16.msra.mxu0 %v412
    %434 = vmatprep.subr.bf16.mxu0 0
    %435 = vmatpush1.bf16.msra.mxu0 %v413
    %436 = vmatprep.subr.bf16.mxu0 0
    %437 = vmatpush1.bf16.msra.mxu0 %v414
    %438 = vmatprep.subr.bf16.mxu0 0
    %439 = vmatpush1.bf16.msra.mxu0 %v415
    %440 = vmatprep.subr.bf16.mxu0 0
    %441 = vmatpush1.bf16.msra.mxu0 0
    %442 = vmatprep.subr.bf16.mxu0 0
    %443 = vmatpush1.bf16.msra.mxu0 0
    %444 = vmatprep.subr.bf16.mxu0 0
    %445 = vmatpush1.bf16.msra.mxu0 0
    %446 = vmatprep.subr.bf16.mxu0 0
    %447 = vmatpush1.bf16.msra.mxu0 0
    %448 = vmatprep.subr.bf16.mxu0 0
    %449 = vmatpush1.bf16.msra.mxu0 0
    %450 = vmatprep.subr.bf16.mxu0 0
    %451 = vmatpush1.bf16.msra.mxu0 0
    %452 = vmatprep.subr.bf16.mxu0 0
    %453 = vmatpush1.bf16.msra.mxu0 0
    %454 = vmatprep.subr.bf16.mxu0 0
    %455 = vmatpush1.bf16.msra.mxu0 0
    %456 = vmatprep.mubr.bf16.mxu0 0
    %457 = vmatmul.mubr.bf16.gmra.mrb[0].mxu0 %v312
    %v458 = vpop.f32.mrb[0].mxu0
    %v459 = vadd.f32 %v182, %v458
    %v460 = vpop.f32.mrb[0].mxu0
    %v461 = vpop.f32.mrb[0].mxu0
    %v462 = vadd.f32 %v182, %v461
    %v463 = vpop.f32.mrb[0].mxu0
    %464 = vmatprep.mubr.bf16.mxu0 0
    %465 = vmatmul.mubr.bf16.gmra.mrb[0].mxu0 %v313
    %v466 = vpop.f32.mrb[0].mxu0
    %v467 = vadd.f32 %v182, %v466
    %v468 = vpop.f32.mrb[0].mxu0
    %v469 = vpop.f32.mrb[0].mxu0
    %v470 = vadd.f32 %v182, %v469
    %v471 = vpop.f32.mrb[0].mxu0
    %472 = vmatprep.mubr.bf16.mxu0 0
    %473 = vmatmul.mubr.bf16.gmra.mrb[0].mxu0 %v314
    %v474 = vpop.f32.mrb[0].mxu0
    %v475 = vadd.f32 %v182, %v474
    %v476 = vpop.f32.mrb[0].mxu0
    %v477 = vpop.f32.mrb[0].mxu0
    %v478 = vadd.f32 %v182, %v477
    %v479 = vpop.f32.mrb[0].mxu0
    %480 = vmatprep.mubr.bf16.mxu0 0
    %481 = vmatmul.mubr.bf16.gmra.mrb[0].mxu0 %v315
    %v482 = vpop.f32.mrb[0].mxu0
    %v483 = vadd.f32 %v182, %v482
    %v484 = vpop.f32.mrb[0].mxu0
    %v485 = vpop.f32.mrb[0].mxu0
    %v486 = vadd.f32 %v182, %v485
    %v487 = vpop.f32.mrb[0].mxu0
    %488 = vmatprep.mubr.bf16.mxu0 0
    %489 = vmatmul.mubr.bf16.gmra.mrb[0].mxu0 %v316
    %v490 = vpop.f32.mrb[0].mxu0
    %v491 = vadd.f32 %v182, %v490
    %v492 = vpop.f32.mrb[0].mxu0
    %v493 = vpop.f32.mrb[0].mxu0
    %v494 = vadd.f32 %v182, %v493
    %v495 = vpop.f32.mrb[0].mxu0
    %496 = vmatprep.mubr.bf16.mxu0 0
    %497 = vmatmul.mubr.bf16.gmra.mrb[0].mxu0 %v317
    %v498 = vpop.f32.mrb[0].mxu0
    %v499 = vadd.f32 %v182, %v498
    %v500 = vpop.f32.mrb[0].mxu0
    %v501 = vpop.f32.mrb[0].mxu0
    %v502 = vadd.f32 %v182, %v501
    %v503 = vpop.f32.mrb[0].mxu0
    %504 = vmatprep.mubr.bf16.mxu0 0
    %505 = vmatmul.mubr.bf16.gmra.mrb[0].mxu0 %v318
    %v506 = vpop.f32.mrb[0].mxu0
    %v507 = vadd.f32 %v182, %v506
    %v508 = vpop.f32.mrb[0].mxu0
    %v509 = vpop.f32.mrb[0].mxu0
    %v510 = vadd.f32 %v182, %v509
    %v511 = vpop.f32.mrb[0].mxu0
    %512 = vmatprep.mubr.bf16.mxu0 0
    %513 = vmatmul.mubr.bf16.gmra.mrb[0].mxu0 %v319
    %v514 = vpop.f32.mrb[0].mxu0
    %v515 = vadd.f32 %v182, %v514
    %v516 = vpop.f32.mrb[0].mxu0
    %v517 = vpop.f32.mrb[0].mxu0
    %v518 = vadd.f32 %v182, %v517
    %v519 = vpop.f32.mrb[0].mxu0
    %520 = vmatprep.mubr.bf16.mxu0 0
    %521 = vmatmul.mubr.bf16.gmra.mrb[0].mxu0 %v320
    %v522 = vpop.f32.mrb[0].mxu0
    %v523 = vadd.f32 %v182, %v522
    %v524 = vpop.f32.mrb[0].mxu0
    %v525 = vpop.f32.mrb[0].mxu0
    %v526 = vadd.f32 %v182, %v525
    %v527 = vpop.f32.mrb[0].mxu0
    %528 = vmatprep.mubr.bf16.mxu0 0
    %529 = vmatmul.mubr.bf16.gmra.mrb[0].mxu0 %v321
    %v530 = vpop.f32.mrb[0].mxu0
    %v531 = vadd.f32 %v182, %v530
    %v532 = vpop.f32.mrb[0].mxu0
    %v533 = vpop.f32.mrb[0].mxu0
    %v534 = vadd.f32 %v182, %v533
    %v535 = vpop.f32.mrb[0].mxu0
    %536 = vmatprep.mubr.bf16.mxu0 0
    %537 = vmatmul.mubr.bf16.gmra.mrb[0].mxu0 %v322
    %v538 = vpop.f32.mrb[0].mxu0
    %v539 = vadd.f32 %v182, %v538
    %v540 = vpop.f32.mrb[0].mxu0
    %v541 = vpop.f32.mrb[0].mxu0
    %v542 = vadd.f32 %v182, %v541
    %v543 = vpop.f32.mrb[0].mxu0
    %544 = vmatprep.mubr.bf16.mxu0 0
    %545 = vmatmul.mubr.bf16.gmra.mrb[0].mxu0 %v323
    %v546 = vpop.f32.mrb[0].mxu0
    %v547 = vadd.f32 %v182, %v546
    %v548 = vpop.f32.mrb[0].mxu0
    %v549 = vpop.f32.mrb[0].mxu0
    %v550 = vadd.f32 %v182, %v549
    %v551 = vpop.f32.mrb[0].mxu0
    %552 = vmatprep.mubr.bf16.mxu0 0
    %553 = vmatmul.mubr.bf16.gmra.mrb[0].mxu0 %v324
    %v554 = vpop.f32.mrb[0].mxu0
    %v555 = vadd.f32 %v182, %v554
    %v556 = vpop.f32.mrb[0].mxu0
    %v557 = vpop.f32.mrb[0].mxu0
    %v558 = vadd.f32 %v182, %v557
    %v559 = vpop.f32.mrb[0].mxu0
    %560 = vmatprep.mubr.bf16.mxu0 0
    %561 = vmatmul.mubr.bf16.gmra.mrb[0].mxu0 %v325
    %v562 = vpop.f32.mrb[0].mxu0
    %v563 = vadd.f32 %v182, %v562
    %v564 = vpop.f32.mrb[0].mxu0
    %v565 = vpop.f32.mrb[0].mxu0
    %v566 = vadd.f32 %v182, %v565
    %v567 = vpop.f32.mrb[0].mxu0
    %568 = vmatprep.mubr.bf16.mxu0 0
    %569 = vmatmul.mubr.bf16.gmra.mrb[0].mxu0 %v326
    %v570 = vpop.f32.mrb[0].mxu0
    %v571 = vadd.f32 %v182, %v570
    %v572 = vpop.f32.mrb[0].mxu0
    %v573 = vpop.f32.mrb[0].mxu0
    %v574 = vadd.f32 %v182, %v573
    %v575 = vpop.f32.mrb[0].mxu0
    %576 = vmatprep.mubr.bf16.mxu0 0
    %577 = vmatmul.mubr.bf16.gmra.mrb[0].mxu0 %v327
    %v578 = vpop.f32.mrb[0].mxu0
    %v579 = vadd.f32 %v182, %v578
    %v580 = vpop.f32.mrb[0].mxu0
    %v581 = vpop.f32.mrb[0].mxu0
    %v582 = vadd.f32 %v182, %v581
    %v583 = vpop.f32.mrb[0].mxu0
    %584 = vmatprep.mubr.bf16.mxu0 0
    %585 = vmatmul.mubr.bf16.gmra.mrb[0].mxu0 %v328
    %v586 = vpop.f32.mrb[0].mxu0
    %v587 = vadd.f32 %v182, %v586
    %v588 = vpop.f32.mrb[0].mxu0
    %v589 = vpop.f32.mrb[0].mxu0
    %v590 = vadd.f32 %v182, %v589
    %v591 = vpop.f32.mrb[0].mxu0
    %592 = vmatprep.mubr.bf16.mxu0 0
    %593 = vmatmul.mubr.bf16.gmra.mrb[0].mxu0 %v329
    %v594 = vpop.f32.mrb[0].mxu0
    %v595 = vadd.f32 %v182, %v594
    %v596 = vpop.f32.mrb[0].mxu0
    %v597 = vpop.f32.mrb[0].mxu0
    %v598 = vadd.f32 %v182, %v597
    %v599 = vpop.f32.mrb[0].mxu0
    %600 = vmatprep.mubr.bf16.mxu0 0
    %601 = vmatmul.mubr.bf16.gmra.mrb[0].mxu0 %v330
    %v602 = vpop.f32.mrb[0].mxu0
    %v603 = vadd.f32 %v182, %v602
    %v604 = vpop.f32.mrb[0].mxu0
    %v605 = vpop.f32.mrb[0].mxu0
    %v606 = vadd.f32 %v182, %v605
    %v607 = vpop.f32.mrb[0].mxu0
    %608 = vmatprep.mubr.bf16.mxu0 0
    %609 = vmatmul.mubr.bf16.gmra.mrb[0].mxu0 %v331
    %v610 = vpop.f32.mrb[0].mxu0
    %v611 = vadd.f32 %v182, %v610
    %v612 = vpop.f32.mrb[0].mxu0
    %v613 = vpop.f32.mrb[0].mxu0
    %v614 = vadd.f32 %v182, %v613
    %v615 = vpop.f32.mrb[0].mxu0
    %616 = vmatprep.mubr.bf16.mxu0 0
    %617 = vmatmul.mubr.bf16.gmra.mrb[0].mxu0 %v332
    %v618 = vpop.f32.mrb[0].mxu0
    %v619 = vadd.f32 %v182, %v618
    %v620 = vpop.f32.mrb[0].mxu0
    %v621 = vpop.f32.mrb[0].mxu0
    %v622 = vadd.f32 %v182, %v621
    %v623 = vpop.f32.mrb[0].mxu0
    %624 = vmatprep.mubr.bf16.mxu0 0
    %625 = vmatmul.mubr.bf16.gmra.mrb[0].mxu0 %v333
    %v626 = vpop.f32.mrb[0].mxu0
    %v627 = vadd.f32 %v182, %v626
    %v628 = vpop.f32.mrb[0].mxu0
    %v629 = vpop.f32.mrb[0].mxu0
    %v630 = vadd.f32 %v182, %v629
    %v631 = vpop.f32.mrb[0].mxu0
    %632 = vmatprep.mubr.bf16.mxu0 0
    %633 = vmatmul.mubr.bf16.gmra.mrb[0].mxu0 %v334
    %v634 = vpop.f32.mrb[0].mxu0
    %v635 = vadd.f32 %v182, %v634
    %v636 = vpop.f32.mrb[0].mxu0
    %v637 = vpop.f32.mrb[0].mxu0
    %v638 = vadd.f32 %v182, %v637
    %v639 = vpop.f32.mrb[0].mxu0
    %640 = vmatprep.mubr.bf16.mxu0 0
    %641 = vmatmul.mubr.bf16.gmra.mrb[0].mxu0 %v335
    %v642 = vpop.f32.mrb[0].mxu0
    %v643 = vadd.f32 %v182, %v642
    %v644 = vpop.f32.mrb[0].mxu0
    %v645 = vpop.f32.mrb[0].mxu0
    %v646 = vadd.f32 %v182, %v645
    %v647 = vpop.f32.mrb[0].mxu0
    %648 = vmatprep.mubr.bf16.mxu0 0
    %649 = vmatmul.mubr.bf16.gmra.mrb[0].mxu0 %v336
    %v650 = vpop.f32.mrb[0].mxu0
    %v651 = vadd.f32 %v182, %v650
    %v652 = vpop.f32.mrb[0].mxu0
    %v653 = vpop.f32.mrb[0].mxu0
    %v654 = vadd.f32 %v182, %v653
    %v655 = vpop.f32.mrb[0].mxu0
    %656 = vmatprep.mubr.bf16.mxu0 0
    %657 = vmatmul.mubr.bf16.gmra.mrb[0].mxu0 %v337
    %v658 = vpop.f32.mrb[0].mxu0
    %v659 = vadd.f32 %v182, %v658
    %v660 = vpop.f32.mrb[0].mxu0
    %v661 = vpop.f32.mrb[0].mxu0
    %v662 = vadd.f32 %v182, %v661
    %v663 = vpop.f32.mrb[0].mxu0
    %664 = vmatprep.mubr.bf16.mxu0 0
    %665 = vmatmul.mubr.bf16.gmra.mrb[0].mxu0 %v338
    %v666 = vpop.f32.mrb[0].mxu0
    %v667 = vadd.f32 %v182, %v666
    %v668 = vpop.f32.mrb[0].mxu0
    %v669 = vpop.f32.mrb[0].mxu0
    %v670 = vadd.f32 %v182, %v669
    %v671 = vpop.f32.mrb[0].mxu0
    %672 = vmatprep.mubr.bf16.mxu0 0
    %673 = vmatmul.mubr.bf16.gmra.mrb[0].mxu0 %v339
    %v674 = vpop.f32.mrb[0].mxu0
    %v675 = vadd.f32 %v182, %v674
    %v676 = vpop.f32.mrb[0].mxu0
    %v677 = vpop.f32.mrb[0].mxu0
    %v678 = vadd.f32 %v182, %v677
    %v679 = vpop.f32.mrb[0].mxu0
    %680 = vmatprep.mubr.bf16.mxu0 0
    %681 = vmatmul.mubr.bf16.gmra.mrb[0].mxu0 %v340
    %v682 = vpop.f32.mrb[0].mxu0
    %v683 = vadd.f32 %v182, %v682
    %v684 = vpop.f32.mrb[0].mxu0
    %v685 = vpop.f32.mrb[0].mxu0
    %v686 = vadd.f32 %v182, %v685
    %v687 = vpop.f32.mrb[0].mxu0
    %688 = vmatprep.mubr.bf16.mxu0 0
    %689 = vmatmul.mubr.bf16.gmra.mrb[0].mxu0 %v341
    %v690 = vpop.f32.mrb[0].mxu0
    %v691 = vadd.f32 %v182, %v690
    %v692 = vpop.f32.mrb[0].mxu0
    %v693 = vpop.f32.mrb[0].mxu0
    %v694 = vadd.f32 %v182, %v693
    %v695 = vpop.f32.mrb[0].mxu0
    %696 = vmatprep.mubr.bf16.mxu0 0
    %697 = vmatmul.mubr.bf16.gmra.mrb[0].mxu0 %v342
    %v698 = vpop.f32.mrb[0].mxu0
    %v699 = vadd.f32 %v182, %v698
    %v700 = vpop.f32.mrb[0].mxu0
    %v701 = vpop.f32.mrb[0].mxu0
    %v702 = vadd.f32 %v182, %v701
    %v703 = vpop.f32.mrb[0].mxu0
    %704 = vmatprep.mubr.bf16.mxu0 0
    %705 = vmatmul.mubr.bf16.gmra.mrb[0].mxu0 %v343
    %v706 = vpop.f32.mrb[0].mxu0
    %v707 = vadd.f32 %v182, %v706
    %v708 = vpop.f32.mrb[0].mxu0
    %v709 = vpop.f32.mrb[0].mxu0
    %v710 = vadd.f32 %v182, %v709
    %v711 = vpop.f32.mrb[0].mxu0
    %712 = vdwg.mxu0
    %v713 = vmax.f32 %v459, 0.0
    %v714 = vmax.f32 %v462, 0.0
    %v715 = vmax.f32 %v467, 0.0
    %v716 = vmax.f32 %v470, 0.0
    %v717 = vmax.f32 %v475, 0.0
    %v718 = vmax.f32 %v478, 0.0
    %v719 = vmax.f32 %v483, 0.0
    %v720 = vmax.f32 %v486, 0.0
    %v721 = vmax.f32 %v491, 0.0
    %v722 = vmax.f32 %v494, 0.0
    %v723 = vmax.f32 %v499, 0.0
    %v724 = vmax.f32 %v502, 0.0
    %v725 = vmax.f32 %v507, 0.0
    %v726 = vmax.f32 %v510, 0.0
    %v727 = vmax.f32 %v515, 0.0
    %v728 = vmax.f32 %v518, 0.0
    %v729 = vmax.f32 %v523, 0.0
    %v730 = vmax.f32 %v526, 0.0
    %v731 = vmax.f32 %v531, 0.0
    %v732 = vmax.f32 %v534, 0.0
    %v733 = vmax.f32 %v539, 0.0
    %v734 = vmax.f32 %v542, 0.0
    %v735 = vmax.f32 %v547, 0.0
    %v736 = vmax.f32 %v550, 0.0
    %v737 = vmax.f32 %v555, 0.0
    %v738 = vmax.f32 %v558, 0.0
    %v739 = vmax.f32 %v563, 0.0
    %v740 = vmax.f32 %v566, 0.0
    %v741 = vmax.f32 %v571, 0.0
    %v742 = vmax.f32 %v574, 0.0
    %v743 = vmax.f32 %v579, 0.0
    %v744 = vmax.f32 %v582, 0.0
    %v745 = vmax.f32 %v587, 0.0
    %v746 = vmax.f32 %v590, 0.0
    %v747 = vmax.f32 %v595, 0.0
    %v748 = vmax.f32 %v598, 0.0
    %v749 = vmax.f32 %v603, 0.0
    %v750 = vmax.f32 %v606, 0.0
    %v751 = vmax.f32 %v611, 0.0
    %v752 = vmax.f32 %v614, 0.0
    %v753 = vmax.f32 %v619, 0.0
    %v754 = vmax.f32 %v622, 0.0
    %v755 = vmax.f32 %v627, 0.0
    %v756 = vmax.f32 %v630, 0.0
    %v757 = vmax.f32 %v635, 0.0
    %v758 = vmax.f32 %v638, 0.0
    %v759 = vmax.f32 %v643, 0.0
    %v760 = vmax.f32 %v646, 0.0
    %v761 = vmax.f32 %v651, 0.0
    %v762 = vmax.f32 %v654, 0.0
    %v763 = vmax.f32 %v659, 0.0
    %v764 = vmax.f32 %v662, 0.0
    %v765 = vmax.f32 %v667, 0.0
    %v766 = vmax.f32 %v670, 0.0
    %v767 = vmax.f32 %v675, 0.0
    %v768 = vmax.f32 %v678, 0.0
    %v769 = vmax.f32 %v683, 0.0
    %v770 = vmax.f32 %v686, 0.0
    %v771 = vmax.f32 %v691, 0.0
    %v772 = vmax.f32 %v694, 0.0
    %v773 = vmax.f32 %v699, 0.0
    %v774 = vmax.f32 %v702, 0.0
    %v775 = vmax.f32 %v707, 0.0
    %v776 = vmax.f32 %v710, 0.0
    %v777 = vld [vmem:[#allocation7] sm:$0xff]
    %v778 = vld [vmem:[#allocation7 + $0x8] sm:$0xff]
    %v779 = vpack.c.bf16 %v714, %v713
    %v780 = vpack.c.bf16 %v716, %v715
    %v781 = vpack.c.bf16 %v718, %v717
    %v782 = vpack.c.bf16 %v720, %v719
    %v783 = vpack.c.bf16 %v722, %v721
    %v784 = vpack.c.bf16 %v724, %v723
    %v785 = vpack.c.bf16 %v726, %v725
    %v786 = vpack.c.bf16 %v728, %v727
    %v787 = vpack.c.bf16 %v730, %v729
    %v788 = vpack.c.bf16 %v732, %v731
    %v789 = vpack.c.bf16 %v734, %v733
    %v790 = vpack.c.bf16 %v736, %v735
    %v791 = vpack.c.bf16 %v738, %v737
    %v792 = vpack.c.bf16 %v740, %v739
    %v793 = vpack.c.bf16 %v742, %v741
    %v794 = vpack.c.bf16 %v744, %v743
    %v795 = vpack.c.bf16 %v746, %v745
    %v796 = vpack.c.bf16 %v748, %v747
    %v797 = vpack.c.bf16 %v750, %v749
    %v798 = vpack.c.bf16 %v752, %v751
    %v799 = vpack.c.bf16 %v754, %v753
    %v800 = vpack.c.bf16 %v756, %v755
    %v801 = vpack.c.bf16 %v758, %v757
    %v802 = vpack.c.bf16 %v760, %v759
    %v803 = vpack.c.bf16 %v762, %v761
    %v804 = vpack.c.bf16 %v764, %v763
    %v805 = vpack.c.bf16 %v766, %v765
    %v806 = vpack.c.bf16 %v768, %v767
    %v807 = vpack.c.bf16 %v770, %v769
    %v808 = vpack.c.bf16 %v772, %v771
    %v809 = vpack.c.bf16 %v774, %v773
    %v810 = vpack.c.bf16 %v776, %v775
    %v813 = vunpack.c.l.b16 %v777
    %v814 = vunpack.c.h.b16 %v777
    %v815 = vunpack.c.l.b16 %v778
    %v816 = vunpack.c.h.b16 %v778
    %v817 = vpack.c.b16 %v813, %v813
    %v818 = vpack.c.b16 %v814, %v814
    %v819 = vpack.c.b16 %v815, %v815
    %v820 = vpack.c.b16 %v816, %v816
    %825 = vmatprep.subr.bf16.mxu0 0
    %826 = vmatpush1.bf16.msra.mxu0 %v779
    %827 = vmatprep.subr.bf16.mxu0 0
    %828 = vmatpush1.bf16.msra.mxu0 %v780
    %829 = vmatprep.subr.bf16.mxu0 0
    %830 = vmatpush1.bf16.msra.mxu0 %v781
    %831 = vmatprep.subr.bf16.mxu0 0
    %832 = vmatpush1.bf16.msra.mxu0 %v782
    %833 = vmatprep.subr.bf16.mxu0 0
    %834 = vmatpush1.bf16.msra.mxu0 %v783
    %835 = vmatprep.subr.bf16.mxu0 0
    %836 = vmatpush1.bf16.msra.mxu0 %v784
    %837 = vmatprep.subr.bf16.mxu0 0
    %838 = vmatpush1.bf16.msra.mxu0 %v785
    %839 = vmatprep.subr.bf16.mxu0 0
    %840 = vmatpush1.bf16.msra.mxu0 %v786
    %841 = vmatprep.subr.bf16.mxu0 0
    %842 = vmatpush1.bf16.msra.mxu0 %v787
    %843 = vmatprep.subr.bf16.mxu0 0
    %844 = vmatpush1.bf16.msra.mxu0 %v788
    %845 = vmatprep.subr.bf16.mxu0 0
    %846 = vmatpush1.bf16.msra.mxu0 %v789
    %847 = vmatprep.subr.bf16.mxu0 0
    %848 = vmatpush1.bf16.msra.mxu0 %v790
    %849 = vmatprep.subr.bf16.mxu0 0
    %850 = vmatpush1.bf16.msra.mxu0 %v791
    %851 = vmatprep.subr.bf16.mxu0 0
    %852 = vmatpush1.bf16.msra.mxu0 %v792
    %853 = vmatprep.subr.bf16.mxu0 0
    %854 = vmatpush1.bf16.msra.mxu0 %v793
    %855 = vmatprep.subr.bf16.mxu0 0
    %856 = vmatpush1.bf16.msra.mxu0 %v794
    %857 = vmatprep.mubr.bf16.mxu0 %v818
    %858 = vmatmul.mubr.bf16.gmra.mrb[0].mxu0 %v817
    %v859 = vpop.f32.mrb[0].mxu0
    %v860 = vadd.f32 0.0, %v859
    %v861 = vpop.f32.mrb[0].mxu0
    %v862 = vpop.f32.mrb[0].mxu0
    %v863 = vpop.f32.mrb[0].mxu0
    %864 = vdwg.mxu0
    %865 = vmatprep.subr.bf16.mxu0 0
    %866 = vmatpush1.bf16.msra.mxu0 %v795
    %867 = vmatprep.subr.bf16.mxu0 0
    %868 = vmatpush1.bf16.msra.mxu0 %v796
    %869 = vmatprep.subr.bf16.mxu0 0
    %870 = vmatpush1.bf16.msra.mxu0 %v797
    %871 = vmatprep.subr.bf16.mxu0 0
    %872 = vmatpush1.bf16.msra.mxu0 %v798
    %873 = vmatprep.subr.bf16.mxu0 0
    %874 = vmatpush1.bf16.msra.mxu0 %v799
    %875 = vmatprep.subr.bf16.mxu0 0
    %876 = vmatpush1.bf16.msra.mxu0 %v800
    %877 = vmatprep.subr.bf16.mxu0 0
    %878 = vmatpush1.bf16.msra.mxu0 %v801
    %879 = vmatprep.subr.bf16.mxu0 0
    %880 = vmatpush1.bf16.msra.mxu0 %v802
    %881 = vmatprep.subr.bf16.mxu0 0
    %882 = vmatpush1.bf16.msra.mxu0 %v803
    %883 = vmatprep.subr.bf16.mxu0 0
    %884 = vmatpush1.bf16.msra.mxu0 %v804
    %885 = vmatprep.subr.bf16.mxu0 0
    %886 = vmatpush1.bf16.msra.mxu0 %v805
    %887 = vmatprep.subr.bf16.mxu0 0
    %888 = vmatpush1.bf16.msra.mxu0 %v806
    %889 = vmatprep.subr.bf16.mxu0 0
    %890 = vmatpush1.bf16.msra.mxu0 %v807
    %891 = vmatprep.subr.bf16.mxu0 0
    %892 = vmatpush1.bf16.msra.mxu0 %v808
    %893 = vmatprep.subr.bf16.mxu0 0
    %894 = vmatpush1.bf16.msra.mxu0 %v809
    %895 = vmatprep.subr.bf16.mxu0 0
    %896 = vmatpush1.bf16.msra.mxu0 %v810
    %897 = vmatprep.mubr.bf16.mxu0 %v820
    %898 = vmatmul.mubr.bf16.gmra.mrb[0].mxu0 %v819
    %v899 = vpop.f32.mrb[0].mxu0
    %v900 = vadd.f32 %v860, %v899
    %v901 = vpop.f32.mrb[0].mxu0
    %v902 = vpop.f32.mrb[0].mxu0
    %v903 = vpop.f32.mrb[0].mxu0
    %904 = vdwg.mxu0
    %v905 = vpack.c.bf16 %v900, %v900
    %v906 = vld [vmem:[#allocation8] sm:$0xf]
    %v907 = vld [vmem:[#allocation8 + $0x4] sm:$0xf]
    %v908 = vld [vmem:[#allocation8 + $0x8] sm:$0xf]
    %v909 = vld [vmem:[#allocation8 + $0xc] sm:$0xf]
    %v910 = vld [vmem:[#allocation8 + $0x10] sm:$0xf]
    %v911 = vld [vmem:[#allocation8 + $0x14] sm:$0xf]
    %v912 = vld [vmem:[#allocation8 + $0x18] sm:$0xf]
    %v913 = vld [vmem:[#allocation8 + $0x1c] sm:$0xf]
    %v914 = vld [vmem:[#allocation8 + $0x20] sm:$0xf]
    %v915 = vld [vmem:[#allocation8 + $0x24] sm:$0xf]
    %v916 = vld [vmem:[#allocation8 + $0x28] sm:$0xf]
    %v917 = vld [vmem:[#allocation8 + $0x2c] sm:$0xf]
    %v918 = vld [vmem:[#allocation8 + $0x30] sm:$0xf]
    %v919 = vld [vmem:[#allocation8 + $0x34] sm:$0xf]
    %v920 = vld [vmem:[#allocation8 + $0x38] sm:$0xf]
    %v921 = vld [vmem:[#allocation8 + $0x3c] sm:$0xf]
    %v922 = vld [vmem:[%s5] sm:$0x1]
    %v924 = vlaneseq
    %v925 = vshrl.u32 %v924, 7
    %v926 = vsub.s32 0, %v925
    %v927 = vrot.slane %v922, %v926
    %v945 = vunpack.c.l.b16 %v906
    %v946 = vunpack.c.l.b16 %v907
    %v947 = vunpack.c.l.b16 %v908
    %v948 = vunpack.c.l.b16 %v909
    %v949 = vunpack.c.l.b16 %v910
    %v950 = vunpack.c.l.b16 %v911
    %v951 = vunpack.c.l.b16 %v912
    %v952 = vunpack.c.l.b16 %v913
    %v953 = vunpack.c.l.b16 %v914
    %v954 = vunpack.c.l.b16 %v915
    %v955 = vunpack.c.l.b16 %v916
    %v956 = vunpack.c.l.b16 %v917
    %v957 = vunpack.c.l.b16 %v918
    %v958 = vunpack.c.l.b16 %v919
    %v959 = vunpack.c.l.b16 %v920
    %v960 = vunpack.c.l.b16 %v921
    %v961 = vpack.c.b16 %v946, %v945
    %v962 = vpack.c.b16 %v948, %v947
    %v963 = vpack.c.b16 %v950, %v949
    %v964 = vpack.c.b16 %v952, %v951
    %v965 = vpack.c.b16 %v954, %v953
    %v966 = vpack.c.b16 %v956, %v955
    %v967 = vpack.c.b16 %v958, %v957
    %v968 = vpack.c.b16 %v960, %v959
    %977 = vmatprep.subr.bf16.mxu0 0
    %978 = vmatpush1.bf16.msra.mxu0 %v961
    %979 = vmatprep.subr.bf16.mxu0 0
    %980 = vmatpush1.bf16.msra.mxu0 %v962
    %981 = vmatprep.subr.bf16.mxu0 0
    %982 = vmatpush1.bf16.msra.mxu0 %v963
    %983 = vmatprep.subr.bf16.mxu0 0
    %984 = vmatpush1.bf16.msra.mxu0 %v964
    %985 = vmatprep.subr.bf16.mxu0 0
    %986 = vmatpush1.bf16.msra.mxu0 %v965
    %987 = vmatprep.subr.bf16.mxu0 0
    %988 = vmatpush1.bf16.msra.mxu0 %v966
    %989 = vmatprep.subr.bf16.mxu0 0
    %990 = vmatpush1.bf16.msra.mxu0 %v967
    %991 = vmatprep.subr.bf16.mxu0 0
    %992 = vmatpush1.bf16.msra.mxu0 %v968
    %993 = vmatprep.subr.bf16.mxu0 0
    %994 = vmatpush1.bf16.msra.mxu0 0
    %995 = vmatprep.subr.bf16.mxu0 0
    %996 = vmatpush1.bf16.msra.mxu0 0
    %997 = vmatprep.subr.bf16.mxu0 0
    %998 = vmatpush1.bf16.msra.mxu0 0
    %999 = vmatprep.subr.bf16.mxu0 0
    %1000 = vmatpush1.bf16.msra.mxu0 0
    %1001 = vmatprep.subr.bf16.mxu0 0
    %1002 = vmatpush1.bf16.msra.mxu0 0
    %1003 = vmatprep.subr.bf16.mxu0 0
    %1004 = vmatpush1.bf16.msra.mxu0 0
    %1005 = vmatprep.subr.bf16.mxu0 0
    %1006 = vmatpush1.bf16.msra.mxu0 0
    %1007 = vmatprep.subr.bf16.mxu0 0
    %1008 = vmatpush1.bf16.msra.mxu0 0
    %1009 = vmatprep.mubr.bf16.mxu0 0
    %1010 = vmatmul.mubr.bf16.gmra.mrb[0].mxu0 %v905
    %v1011 = vpop.f32.mrb[0].mxu0
    %v1012 = vadd.f32 %v927, %v1011
    %v1013 = vpop.f32.mrb[0].mxu0
    %v1014 = vpop.f32.mrb[0].mxu0
    %v1015 = vpop.f32.mrb[0].mxu0
    %1016 = vdwg.mxu0
    %v1017 = vmax.f32 %v1012, 0.0
    %v1018 = vpack.c.bf16 %v1017, %v1017
    %s1019 = scalar_lea.vmem [#allocation8], 64
    %v1020 = vld [vmem:[%s1019] sm:$0xf]
    %v1021 = vld [vmem:[%s1019 + $0x4] sm:$0xf]
    %v1022 = vld [vmem:[%s1019 + $0x8] sm:$0xf]
    %v1023 = vld [vmem:[%s1019 + $0xc] sm:$0xf]
    %v1024 = vld [vmem:[%s1019 + $0x10] sm:$0xf]
    %v1025 = vld [vmem:[%s1019 + $0x14] sm:$0xf]
    %v1026 = vld [vmem:[%s1019 + $0x18] sm:$0xf]
    %v1027 = vld [vmem:[%s1019 + $0x1c] sm:$0xf]
    %v1028 = vld [vmem:[%s1019 + $0x20] sm:$0xf]
    %v1029 = vld [vmem:[%s1019 + $0x24] sm:$0xf]
    %v1030 = vld [vmem:[%s1019 + $0x28] sm:$0xf]
    %v1031 = vld [vmem:[%s1019 + $0x2c] sm:$0xf]
    %v1032 = vld [vmem:[%s1019 + $0x30] sm:$0xf]
    %v1033 = vld [vmem:[%s1019 + $0x34] sm:$0xf]
    %v1034 = vld [vmem:[%s1019 + $0x38] sm:$0xf]
    %v1035 = vld [vmem:[%s1019 + $0x3c] sm:$0xf]
    %s1036 = scalar_lea.vmem %s5, 1
    %v1037 = vld [vmem:[%s1036] sm:$0x1]
    %v1039 = vlaneseq
    %v1040 = vshrl.u32 %v1039, 7
    %v1041 = vsub.s32 0, %v1040
    %v1042 = vrot.slane %v1037, %v1041
    %v1060 = vunpack.c.l.b16 %v1020
    %v1061 = vunpack.c.l.b16 %v1021
    %v1062 = vunpack.c.l.b16 %v1022
    %v1063 = vunpack.c.l.b16 %v1023
    %v1064 = vunpack.c.l.b16 %v1024
    %v1065 = vunpack.c.l.b16 %v1025
    %v1066 = vunpack.c.l.b16 %v1026
    %v1067 = vunpack.c.l.b16 %v1027
    %v1068 = vunpack.c.l.b16 %v1028
    %v1069 = vunpack.c.l.b16 %v1029
    %v1070 = vunpack.c.l.b16 %v1030
    %v1071 = vunpack.c.l.b16 %v1031
    %v1072 = vunpack.c.l.b16 %v1032
    %v1073 = vunpack.c.l.b16 %v1033
    %v1074 = vunpack.c.l.b16 %v1034
    %v1075 = vunpack.c.l.b16 %v1035
    %v1076 = vpack.c.b16 %v1061, %v1060
    %v1077 = vpack.c.b16 %v1063, %v1062
    %v1078 = vpack.c.b16 %v1065, %v1064
    %v1079 = vpack.c.b16 %v1067, %v1066
    %v1080 = vpack.c.b16 %v1069, %v1068
    %v1081 = vpack.c.b16 %v1071, %v1070
    %v1082 = vpack.c.b16 %v1073, %v1072
    %v1083 = vpack.c.b16 %v1075, %v1074
    %1092 = vmatprep.subr.bf16.mxu0 0
    %1093 = vmatpush1.bf16.msra.mxu0 %v1076
    %1094 = vmatprep.subr.bf16.mxu0 0
    %1095 = vmatpush1.bf16.msra.mxu0 %v1077
    %1096 = vmatprep.subr.bf16.mxu0 0
    %1097 = vmatpush1.bf16.msra.mxu0 %v1078
    %1098 = vmatprep.subr.bf16.mxu0 0
    %1099 = vmatpush1.bf16.msra.mxu0 %v1079
    %1100 = vmatprep.subr.bf16.mxu0 0
    %1101 = vmatpush1.bf16.msra.mxu0 %v1080
    %1102 = vmatprep.subr.bf16.mxu0 0
    %1103 = vmatpush1.bf16.msra.mxu0 %v1081
    %1104 = vmatprep.subr.bf16.mxu0 0
    %1105 = vmatpush1.bf16.msra.mxu0 %v1082
    %1106 = vmatprep.subr.bf16.mxu0 0
    %1107 = vmatpush1.bf16.msra.mxu0 %v1083
    %1108 = vmatprep.subr.bf16.mxu0 0
    %1109 = vmatpush1.bf16.msra.mxu0 0
    %1110 = vmatprep.subr.bf16.mxu0 0
    %1111 = vmatpush1.bf16.msra.mxu0 0
    %1112 = vmatprep.subr.bf16.mxu0 0
    %1113 = vmatpush1.bf16.msra.mxu0 0
    %1114 = vmatprep.subr.bf16.mxu0 0
    %1115 = vmatpush1.bf16.msra.mxu0 0
    %1116 = vmatprep.subr.bf16.mxu0 0
    %1117 = vmatpush1.bf16.msra.mxu0 0
    %1118 = vmatprep.subr.bf16.mxu0 0
    %1119 = vmatpush1.bf16.msra.mxu0 0
    %1120 = vmatprep.subr.bf16.mxu0 0
    %1121 = vmatpush1.bf16.msra.mxu0 0
    %1122 = vmatprep.subr.bf16.mxu0 0
    %1123 = vmatpush1.bf16.msra.mxu0 0
    %1124 = vmatprep.mubr.bf16.mxu0 0
    %1125 = vmatmul.mubr.bf16.gmra.mrb[0].mxu0 %v1018
    %v1126 = vpop.f32.mrb[0].mxu0
    %v1127 = vadd.f32 %v1042, %v1126
    %v1128 = vpop.f32.mrb[0].mxu0
    %v1129 = vpop.f32.mrb[0].mxu0
    %v1130 = vpop.f32.mrb[0].mxu0
    %1131 = vdwg.mxu0
    %v1132 = vmax.f32 %v1127, 0.0
    %v1133 = vpack.c.bf16 %v1132, %v1132
    %v1134 = vld [vmem:[#allocation10] sm:$0xf]
    %v1135 = vld [vmem:[#allocation10 + $0x4] sm:$0xf]
    %v1136 = vld [vmem:[#allocation10 + $0x8] sm:$0xf]
    %v1137 = vld [vmem:[#allocation10 + $0xc] sm:$0xf]
    %v1138 = vld [vmem:[#allocation10 + $0x10] sm:$0xf]
    %v1139 = vld [vmem:[#allocation10 + $0x14] sm:$0xf]
    %v1140 = vld [vmem:[#allocation10 + $0x18] sm:$0xf]
    %v1141 = vld [vmem:[#allocation10 + $0x1c] sm:$0xf]
    %v1142 = vld [vmem:[#allocation10 + $0x20] sm:$0xf]
    %v1143 = vld [vmem:[#allocation10 + $0x24] sm:$0xf]
    %v1144 = vld [vmem:[#allocation10 + $0x28] sm:$0xf]
    %v1145 = vld [vmem:[#allocation10 + $0x2c] sm:$0xf]
    %v1146 = vld [vmem:[#allocation10 + $0x30] sm:$0xf]
    %v1147 = vld [vmem:[#allocation10 + $0x34] sm:$0xf]
    %v1148 = vld [vmem:[#allocation10 + $0x38] sm:$0xf]
    %v1149 = vld [vmem:[#allocation10 + $0x3c] sm:$0xf]
    %v1150 = vld [vmem:[%s7] sm:$0x1]
    %v1152 = vlaneseq
    %v1153 = vshrl.u32 %v1152, 7
    %v1154 = vsub.s32 0, %v1153
    %v1155 = vrot.slane %v1150, %v1154
    %v1173 = vunpack.c.l.b16 %v1134
    %v1174 = vunpack.c.l.b16 %v1135
    %v1175 = vunpack.c.l.b16 %v1136
    %v1176 = vunpack.c.l.b16 %v1137
    %v1177 = vunpack.c.l.b16 %v1138
    %v1178 = vunpack.c.l.b16 %v1139
    %v1179 = vunpack.c.l.b16 %v1140
    %v1180 = vunpack.c.l.b16 %v1141
    %v1181 = vunpack.c.l.b16 %v1142
    %v1182 = vunpack.c.l.b16 %v1143
    %v1183 = vunpack.c.l.b16 %v1144
    %v1184 = vunpack.c.l.b16 %v1145
    %v1185 = vunpack.c.l.b16 %v1146
    %v1186 = vunpack.c.l.b16 %v1147
    %v1187 = vunpack.c.l.b16 %v1148
    %v1188 = vunpack.c.l.b16 %v1149
    %v1189 = vpack.c.b16 %v1174, %v1173
    %v1190 = vpack.c.b16 %v1176, %v1175
    %v1191 = vpack.c.b16 %v1178, %v1177
    %v1192 = vpack.c.b16 %v1180, %v1179
    %v1193 = vpack.c.b16 %v1182, %v1181
    %v1194 = vpack.c.b16 %v1184, %v1183
    %v1195 = vpack.c.b16 %v1186, %v1185
    %v1196 = vpack.c.b16 %v1188, %v1187
    %1205 = vmatprep.subr.bf16.mxu0 0
    %1206 = vmatpush1.bf16.msra.mxu0 %v1189
    %1207 = vmatprep.subr.bf16.mxu0 0
    %1208 = vmatpush1.bf16.msra.mxu0 %v1190
    %1209 = vmatprep.subr.bf16.mxu0 0
    %1210 = vmatpush1.bf16.msra.mxu0 %v1191
    %1211 = vmatprep.subr.bf16.mxu0 0
    %1212 = vmatpush1.bf16.msra.mxu0 %v1192
    %1213 = vmatprep.subr.bf16.mxu0 0
    %1214 = vmatpush1.bf16.msra.mxu0 %v1193
    %1215 = vmatprep.subr.bf16.mxu0 0
    %1216 = vmatpush1.bf16.msra.mxu0 %v1194
    %1217 = vmatprep.subr.bf16.mxu0 0
    %1218 = vmatpush1.bf16.msra.mxu0 %v1195
    %1219 = vmatprep.subr.bf16.mxu0 0
    %1220 = vmatpush1.bf16.msra.mxu0 %v1196
    %1221 = vmatprep.subr.bf16.mxu0 0
    %1222 = vmatpush1.bf16.msra.mxu0 0
    %1223 = vmatprep.subr.bf16.mxu0 0
    %1224 = vmatpush1.bf16.msra.mxu0 0
    %1225 = vmatprep.subr.bf16.mxu0 0
    %1226 = vmatpush1.bf16.msra.mxu0 0
    %1227 = vmatprep.subr.bf16.mxu0 0
    %1228 = vmatpush1.bf16.msra.mxu0 0
    %1229 = vmatprep.subr.bf16.mxu0 0
    %1230 = vmatpush1.bf16.msra.mxu0 0
    %1231 = vmatprep.subr.bf16.mxu0 0
    %1232 = vmatpush1.bf16.msra.mxu0 0
    %1233 = vmatprep.subr.bf16.mxu0 0
    %1234 = vmatpush1.bf16.msra.mxu0 0
    %1235 = vmatprep.subr.bf16.mxu0 0
    %1236 = vmatpush1.bf16.msra.mxu0 0
    %1237 = vmatprep.mubr.bf16.mxu0 0
    %1238 = vmatmul.mubr.bf16.gmra.mrb[0].mxu0 %v1133
    %v1239 = vpop.f32.mrb[0].mxu0
    %v1240 = vadd.f32 %v1155, %v1239
    %v1241 = vpop.f32.mrb[0].mxu0
    %v1242 = vpop.f32.mrb[0].mxu0
    %v1243 = vpop.f32.mrb[0].mxu0
    %1244 = vdwg.mxu0
    %1245 = vst [vmem:[#allocation11] sm:$0xff] %v1240
    // Predicated region
    $region54: #{tpu_custom_call.1} parent=1 // pred_check
      _
    $region55: #{tpu_custom_call.1} parent=1 // pred_check_branch
      %1247 = sbr.rel (0) target = $region57
    $region56: #{tpu_custom_call.1} parent=1 // pred_region
      %s1249 = ssub.s32 128, 128
      %1250 = vsyncadd [#allocation4], %s1249
      %s1252 = sshll.u32 [#allocation11], 4
      %s1253 = int_to_ptr.vmem [resolvable:$true] %s1252
      %1255 = dma.vmem_to_hbm [thread:$0]  %s1253, 128, %s8, [#allocation4]
    $region57: #{tpu_custom_call.1} parent=1 // pred_fallthru
      _
    // Predicated region
    $region58: #{tpu_custom_call.1} parent=1 // pred_check
      _
    $region59: #{tpu_custom_call.1} parent=1 // pred_check_branch
      %1257 = sbr.rel (0) target = $region61
    $region60: #{tpu_custom_call.1} parent=1 // pred_region
      %1258 = dma.done [#allocation4], 128
    $region61: #{tpu_custom_call.1} parent=1 // pred_fallthru
      _
    %1259 = vsyncpa [#allocation3], 1
    %1260 = vsyncpa [#allocation6], 1
    %1261 = vsyncpa [#allocation9], 1
    %1262 = vsyncpa [#allocation4], 1

</llo_original>
